<compile_context>
chip_gen: v7x
topology: tpu7x:2x2x1
jax: 0.10.0
libtpu: 0.0.40
codegen_flags: <defaults>
</compile_context>

<pallas_src>
import functools

import jax
import jax.numpy as jnp
from jax.experimental import pallas as pl
from jax.experimental.pallas import tpu as pltpu


def _fused_kernel(tab_ref, ts_ref, w0_ref, wrest_ref, bias_ref, out_ref, *,
                  drop_last_in_kernel):
    """One batch tile of the fused forward.

    tab_ref  : (TB, T or T_tab, d) tabular tokens (glue token excluded by the
               BlockSpec window unless drop_last_in_kernel).
    ts_ref   : (TB, S, d)  time-series tokens.
    w0_ref   : (2d, d)     fused layer-0 weight (mean scales folded in).
    wrest_ref: (2, d, d)   [W2, Wh].
    bias_ref : (3, d) f32  [b0_eff, b2, bh].
    out_ref  : (TB, d).
    """
    cdt = w0_ref.dtype  # MXU operand dtype (bf16 or f32)

    tab = tab_ref[...]
    tab_sum = jnp.sum(tab, axis=1)
    if drop_last_in_kernel:
        # Block holds all T_tab tokens; remove the glue token's contribution.
        tab_sum = tab_sum - tab[:, -1, :]
    ts_sum = jnp.sum(ts_ref[...], axis=1)

    # Layer 0: single K=2d matmul on [tab_sum | ts_sum] (scales are in W0).
    x0 = jnp.concatenate([tab_sum, ts_sum], axis=-1).astype(cdt)      # (TB, 2d)
    h = jnp.dot(x0, w0_ref[...], preferred_element_type=jnp.float32)
    h = jnp.maximum(h + bias_ref[0:1, :], 0.0)

    # MLP layer 1 + ReLU (dropout == identity in eval mode).
    h = jnp.dot(h.astype(cdt), wrest_ref[0],
                preferred_element_type=jnp.float32)
    h = jnp.maximum(h + bias_ref[1:2, :], 0.0)

    # Head.
    out = jnp.dot(h.astype(cdt), wrest_ref[1],
                  preferred_element_type=jnp.float32) + bias_ref[2:3, :]
    out_ref[...] = out.astype(out_ref.dtype)


def _fuse_params(params, n_tab_tokens, n_ts_tokens, compute_dtype):
    """Pre-fuse {tabular_lin_proj + decoupling means + concat + MLP layer 0}.

    Exact: everything up to the first ReLU is affine, and the token mean
    commutes with the per-token linear projection.
    """
    d = params["w2"].shape[0]
    w_tab, b_tab = params["w_tab"], params["b_tab"]   # (d, 2d), (1, 2d)
    w1, b1 = params["w1"], params["b1"]               # (3d, d), (1, d)
    w_tab_eff = w_tab[:, :d] @ w1[:d] + w_tab[:, d:] @ w1[d:2 * d]      # (d, d)
    b0_eff = b_tab[:, :d] @ w1[:d] + b_tab[:, d:] @ w1[d:2 * d] + b1    # (1, d)
    # Fold the 1/T, 1/S mean scales and stack into one (2d, d) layer-0 weight
    # so the kernel issues a single K=2d matmul on raw token sums.
    w0 = jnp.concatenate([w_tab_eff / n_tab_tokens,
                          w1[2 * d:] / n_ts_tokens], axis=0)            # (2d, d)
    w_rest = jnp.stack([params["w2"], params["wh"]], axis=0)            # (2, d, d)
    biases = jnp.concatenate([b0_eff, params["b2"], params["bh"]],
                             axis=0)                                    # (3, d)
    return (w0.astype(compute_dtype), w_rest.astype(compute_dtype),
            biases.astype(jnp.float32))


def _round_up(x, m):
    return ((x + m - 1) // m) * m


def concat_mlp_decoupling_2fts(tab_tokens, ts_tokens, params, *,
                               compute_dtype=jnp.bfloat16, batch_tile=None):
    """Fused forward.  Returns (B, 1, d) like the PyTorch module."""
    B, T_tab, d = tab_tokens.shape
    T = T_tab - 1                      # last (glue) token is dropped
    S = ts_tokens.shape[1]
    w0, w_rest, biases = _fuse_params(params, T, S, compute_dtype)

    # Batch tile:
    #  * B <= 16: a single full-extent tile (legal for any B, splitting a
    #    handful of rows only adds per-step overhead).
    #  * B  > 16: at least 2 tiles so both v7x TensorCores get work through the
    #    "parallel" grid axis; 512-row cap keeps double-buffered f32 token
    #    tiles inside v5e's 16 MiB scoped-VMEM default (v6e/v7x: 32 MiB).
    if batch_tile is None:
        batch_tile = B if B <= 16 else min(512, _round_up(pl.cdiv(B, 2), 8))
    TB = batch_tile
    grid = (pl.cdiv(B, TB),)

    # tab_tokens[:, :-1, :]: zero-copy via the BlockSpec window when T is a
    # multiple of 8 (the (8,128) rule on the second-to-last block dim);
    # otherwise load the full token block and subtract the glue token from the
    # sum inside the kernel.
    drop_last_in_kernel = (T % 8 != 0)
    tab_block_t = T_tab if drop_last_in_kernel else T

    kernel = functools.partial(_fused_kernel,
                               drop_last_in_kernel=drop_last_in_kernel)

    flops = 8 * B * d * d + B * (T_tab + S) * d          # matmuls + token sums
    bytes_accessed = (tab_tokens.size * tab_tokens.dtype.itemsize
                      + ts_tokens.size * ts_tokens.dtype.itemsize
                      + w0.size * w0.dtype.itemsize
                      + w_rest.size * w_rest.dtype.itemsize
                      + biases.size * biases.dtype.itemsize
                      + B * d * 4)

    # NOTE: tail tiles when B % TB != 0 read garbage in the out-of-bounds rows
    # (input DMA only fills the valid region); every output row depends only on
    # its own tokens and output stores are masked, so valid rows are exact.
    out = pl.pallas_call(
        kernel,
        grid=grid,
        in_specs=[
            pl.BlockSpec((TB, tab_block_t, d), lambda i: (i, 0, 0)),
            pl.BlockSpec((TB, S, d), lambda i: (i, 0, 0)),
            # Weights: constant index_maps -> stay VMEM-resident across tiles.
            pl.BlockSpec((2 * d, d), lambda i: (0, 0)),
            pl.BlockSpec((2, d, d), lambda i: (0, 0, 0)),
            pl.BlockSpec((3, d), lambda i: (0, 0)),
        ],
        out_specs=pl.BlockSpec((TB, d), lambda i: (i, 0)),
        out_shape=jax.ShapeDtypeStruct((B, d), jnp.float32),
        compiler_params=pltpu.CompilerParams(
            dimension_semantics=("parallel",)),
        cost_estimate=pl.CostEstimate(
            flops=int(flops), transcendentals=0,
            bytes_accessed=int(bytes_accessed)),
    )(tab_tokens, ts_tokens, w0, w_rest, biases)
    return out[:, None, :]                               # (B, 1, d)


def _init_linear(key, fan_in, fan_out):
    """PyTorch-style Linear init: U(-1/sqrt(fan_in), 1/sqrt(fan_in))."""
    kw, kb = jax.random.split(key)
    bound = 1.0 / (fan_in ** 0.5)
    w = jax.random.uniform(kw, (fan_in, fan_out), jnp.float32, -bound, bound)
    b = jax.random.uniform(kb, (1, fan_out), jnp.float32, -bound, bound)
    return w, b


def make_params(key, d_token):
    keys = jax.random.split(key, 4)
    w_tab, b_tab = _init_linear(keys[0], d_token, 2 * d_token)   # tabular_lin_proj
    w1, b1 = _init_linear(keys[1], 3 * d_token, d_token)         # mlp.layers[0]
    w2, b2 = _init_linear(keys[2], d_token, d_token)             # mlp.layers[1]
    wh, bh = _init_linear(keys[3], d_token, d_token)             # mlp.head
    return dict(w_tab=w_tab, b_tab=b_tab, w1=w1, b1=b1, w2=w2, b2=b2,
                wh=wh, bh=bh)


def _reference(tab_tokens, ts_tokens, p):
    """Pure-JAX mirror of the PyTorch forward (identity encoders, eval mode)."""
    d = p["w2"].shape[0]
    tab = tab_tokens[:, :-1, :]
    proj = tab @ p["w_tab"] + p["b_tab"]                 # (B, T, 2d)
    B = tab.shape[0]
    proj_r = proj.reshape(B, -1, d)
    unique_mean = proj_r[:, ::2, :].mean(axis=1)
    shared_mean = proj_r[:, 1::2, :].mean(axis=1)
    ts_mean = ts_tokens.mean(axis=1)
    x = jnp.concatenate([unique_mean, shared_mean, ts_mean], axis=1)
    h = jnp.maximum(x @ p["w1"] + p["b1"], 0.0)
    h = jnp.maximum(h @ p["w2"] + p["b2"], 0.0)
    out = h @ p["wh"] + p["bh"]
    return out[:, None, :]


if __name__ == "__main__":
    def run_case(B, n_tabular_attrs, n_ts_tokens, d_token):
        key = jax.random.PRNGKey(0)
        k_tab, k_ts, k_par = jax.random.split(key, 3)
        T_tab = n_tabular_attrs + 1          # extra glue/CLS token, dropped in forward
        tab_tokens = jax.random.normal(k_tab, (B, T_tab, d_token), jnp.float32)
        ts_tokens = jax.random.normal(k_ts, (B, n_ts_tokens, d_token), jnp.float32)
        params = make_params(k_par, d_token)
        ref = _reference(tab_tokens, ts_tokens, params)

        # Exact path: f32 operands (pre-fusion is algebraically exact).
        out_f32 = jax.block_until_ready(
            concat_mlp_decoupling_2fts(tab_tokens, ts_tokens, params,
                                       compute_dtype=jnp.float32))
        assert out_f32.shape == (B, 1, d_token), out_f32.shape
        assert jnp.allclose(out_f32, ref, atol=1e-3, rtol=1e-3), \
            f"f32 mismatch vs JAX reference (B={B}, d={d_token})"

        # Default fast path: bf16 MXU operands, f32 accumulation.
        out_bf16 = jax.block_until_ready(
            concat_mlp_decoupling_2fts(tab_tokens, ts_tokens, params))
        assert out_bf16.shape == (B, 1, d_token), out_bf16.shape
        assert jnp.allclose(out_bf16, ref, atol=5e-2, rtol=5e-2), \
            f"bf16 mismatch vs JAX reference (B={B}, d={d_token})"

    # Case 1: zero-copy glue-token drop via BlockSpec window (T = 8, 8-aligned).
    run_case(B=2, n_tabular_attrs=8, n_ts_tokens=8, d_token=128)
    # Case 2: module-default d_token, T not 8-aligned (in-kernel glue-token
    # subtraction) and B % batch_tile != 0 (masked tail tile, 2-tile grid).
    run_case(B=20, n_tabular_attrs=5, n_ts_tokens=7, d_token=192)

    print("KERNEL_OK")
</pallas_src>

<mosaic_0001>
module attributes {stable_mosaic.version = 11 : i64} {
  func.func @_fused_kernel(%arg0: i32, %arg1: memref<2x8x128xf32, #tpu.memory_space<vmem>>, %arg2: memref<2x8x128xf32, #tpu.memory_space<vmem>>, %arg3: memref<256x128xf32, #tpu.memory_space<vmem>>, %arg4: memref<2x128x128xf32, #tpu.memory_space<vmem>>, %arg5: memref<3x128xf32, #tpu.memory_space<vmem>>, %arg6: memref<2x128xf32, #tpu.memory_space<vmem>>) attributes {dimension_semantics = [#tpu.dimension_semantics<parallel>], iteration_bounds = array<i64: 1>, scalar_prefetch = 0 : i64, scratch_operands = 0 : i64, tpu.core_type = #tpu.core_type<tc>, window_params = [{transform_indices = @transform_0, window_bounds = array<i64: 2, 8, 128>}, {transform_indices = @transform_1, window_bounds = array<i64: 2, 8, 128>}, {pipeline_mode = #tpu.pipeline_mode<synchronous>, transform_indices = @transform_2, window_bounds = array<i64: 256, 128>}, {pipeline_mode = #tpu.pipeline_mode<synchronous>, transform_indices = @transform_3, window_bounds = array<i64: 2, 128, 128>}, {pipeline_mode = #tpu.pipeline_mode<synchronous>, transform_indices = @transform_4, window_bounds = array<i64: 3, 128>}, {transform_indices = @transform_5, window_bounds = array<i64: 2, 128>}]} {
    %c0 = arith.constant 0 : index
    %c0_0 = arith.constant 0 : index
    %c0_1 = arith.constant 0 : index
    %0 = vector.load %arg1[%c0, %c0_0, %c0_1] : memref<2x8x128xf32, #tpu.memory_space<vmem>>, vector<2x8x128xf32>
    %cst = arith.constant dense<0.000000e+00> : vector<2x128xf32>
    %1 = vector.multi_reduction <add>, %0, %cst [1] : vector<2x8x128xf32> to vector<2x128xf32>
    %c0_2 = arith.constant 0 : index
    %c0_3 = arith.constant 0 : index
    %c0_4 = arith.constant 0 : index
    %2 = vector.load %arg2[%c0_2, %c0_3, %c0_4] : memref<2x8x128xf32, #tpu.memory_space<vmem>>, vector<2x8x128xf32>
    %cst_5 = arith.constant dense<0.000000e+00> : vector<2x128xf32>
    %3 = vector.multi_reduction <add>, %2, %cst_5 [1] : vector<2x8x128xf32> to vector<2x128xf32>
    %4 = tpu.concatenate %1, %3 in 1 : vector<2x128xf32>, vector<2x128xf32> -> vector<2x256xf32>
    %c0_6 = arith.constant 0 : index
    %c0_7 = arith.constant 0 : index
    %5 = vector.load %arg3[%c0_6, %c0_7] : memref<256x128xf32, #tpu.memory_space<vmem>>, vector<256x128xf32>
    %cst_8 = arith.constant dense<0.000000e+00> : vector<2x128xf32>
    %6 = tpu.matmul %4, %5, %cst_8 {dimension_numbers = #tpu.dot_dimension_numbers<[1], [0], [0], [1], [0, 0, 1, 1], [], []>} : vector<2x256xf32>, vector<256x128xf32>, vector<2x128xf32> -> vector<2x128xf32>
    %c0_9 = arith.constant 0 : index
    %c0_10 = arith.constant 0 : index
    %7 = vector.load %arg5[%c0_9, %c0_10] : memref<3x128xf32, #tpu.memory_space<vmem>>, vector<1x128xf32>
    %8 = vector.broadcast %7 : vector<1x128xf32> to vector<2x128xf32>
    %9 = arith.addf %6, %8 : vector<2x128xf32>
    %cst_11 = arith.constant 0.000000e+00 : f32
    %10 = vector.broadcast %cst_11 : f32 to vector<2x128xf32>
    %11 = arith.maximumf %9, %10 : vector<2x128xf32>
    %c0_12 = arith.constant 0 : index
    %c0_13 = arith.constant 0 : index
    %c0_14 = arith.constant 0 : index
    %12 = vector.load %arg4[%c0_12, %c0_13, %c0_14] : memref<2x128x128xf32, #tpu.memory_space<vmem>>, vector<1x128x128xf32>
    %13 = vector.shape_cast %12 : vector<1x128x128xf32> to vector<128x128xf32>
    %cst_15 = arith.constant dense<0.000000e+00> : vector<2x128xf32>
    %14 = tpu.matmul %11, %13, %cst_15 {dimension_numbers = #tpu.dot_dimension_numbers<[1], [0], [0], [1], [0, 0, 1, 1], [], []>} : vector<2x128xf32>, vector<128x128xf32>, vector<2x128xf32> -> vector<2x128xf32>
    %c1 = arith.constant 1 : index
    %c0_16 = arith.constant 0 : index
    %15 = vector.load %arg5[%c1, %c0_16] : memref<3x128xf32, #tpu.memory_space<vmem>>, vector<1x128xf32>
    %16 = vector.broadcast %15 : vector<1x128xf32> to vector<2x128xf32>
    %17 = arith.addf %14, %16 : vector<2x128xf32>
    %cst_17 = arith.constant 0.000000e+00 : f32
    %18 = vector.broadcast %cst_17 : f32 to vector<2x128xf32>
    %19 = arith.maximumf %17, %18 : vector<2x128xf32>
    %c1_18 = arith.constant 1 : index
    %c0_19 = arith.constant 0 : index
    %c0_20 = arith.constant 0 : index
    %20 = vector.load %arg4[%c1_18, %c0_19, %c0_20] : memref<2x128x128xf32, #tpu.memory_space<vmem>>, vector<1x128x128xf32>
    %21 = vector.shape_cast %20 : vector<1x128x128xf32> to vector<128x128xf32>
    %cst_21 = arith.constant dense<0.000000e+00> : vector<2x128xf32>
    %22 = tpu.matmul %19, %21, %cst_21 {dimension_numbers = #tpu.dot_dimension_numbers<[1], [0], [0], [1], [0, 0, 1, 1], [], []>} : vector<2x128xf32>, vector<128x128xf32>, vector<2x128xf32> -> vector<2x128xf32>
    %c2 = arith.constant 2 : index
    %c0_22 = arith.constant 0 : index
    %23 = vector.load %arg5[%c2, %c0_22] : memref<3x128xf32, #tpu.memory_space<vmem>>, vector<1x128xf32>
    %24 = vector.broadcast %23 : vector<1x128xf32> to vector<2x128xf32>
    %25 = arith.addf %22, %24 : vector<2x128xf32>
    %c0_23 = arith.constant 0 : index
    %c0_24 = arith.constant 0 : index
    %26 = vector.load %arg6[%c0_23, %c0_24] : memref<2x128xf32, #tpu.memory_space<vmem>>, vector<2x128xf32>
    tpu.vector_store %arg6[%c0_23, %c0_24], %25 {strides = array<i32>} : memref<2x128xf32, #tpu.memory_space<vmem>>, vector<2x128xf32>,
    return
  }
  func.func @transform_0(%arg0: i32) -> (i32, i32, i32) {
    %c0_i32 = arith.constant 0 : i32
    %c0_i32_0 = arith.constant 0 : i32
    %c0_i32_1 = arith.constant 0 : i32
    return %arg0, %c0_i32, %c0_i32_0 : i32, i32, i32
  }
  func.func @transform_1(%arg0: i32) -> (i32, i32, i32) {
    %c0_i32 = arith.constant 0 : i32
    %c0_i32_0 = arith.constant 0 : i32
    %c0_i32_1 = arith.constant 0 : i32
    return %arg0, %c0_i32, %c0_i32_0 : i32, i32, i32
  }
  func.func @transform_2(%arg0: i32) -> (i32, i32) {
    %c0_i32 = arith.constant 0 : i32
    %c0_i32_0 = arith.constant 0 : i32
    %c0_i32_1 = arith.constant 0 : i32
    return %c0_i32, %c0_i32_0 : i32, i32
  }
  func.func @transform_3(%arg0: i32) -> (i32, i32, i32) {
    %c0_i32 = arith.constant 0 : i32
    %c0_i32_0 = arith.constant 0 : i32
    %c0_i32_1 = arith.constant 0 : i32
    %c0_i32_2 = arith.constant 0 : i32
    return %c0_i32, %c0_i32_0, %c0_i32_1 : i32, i32, i32
  }
  func.func @transform_4(%arg0: i32) -> (i32, i32) {
    %c0_i32 = arith.constant 0 : i32
    %c0_i32_0 = arith.constant 0 : i32
    %c0_i32_1 = arith.constant 0 : i32
    return %c0_i32, %c0_i32_0 : i32, i32
  }
  func.func @transform_5(%arg0: i32) -> (i32, i32) {
    %c0_i32 = arith.constant 0 : i32
    %c0_i32_0 = arith.constant 0 : i32
    return %arg0, %c0_i32 : i32, i32
  }
}

</mosaic_0001>

<llo_original>
// kernel: tpu_custom_call.1
$region0: #{tpu_custom_call.1}
  #allocation0 [shape = 'u32[]', space=smem, size = 0x4, offset = 0x4, fixed_abs, tag = 'smem constant byte address 0x4 - core index']
  #allocation1 [shape = 'u32[144,128]{1,0:T(1,128)}', space=vmem, size = 0x12000, scoped, tag = 'internal scratch']
  %s0 = inlined_call_operand.vmem [shape: f32[2,9,128], index: 0, kind: input, shape index: {}]
  %s1 = inlined_call_operand.vmem [shape: f32[2,8,128], index: 1, kind: input, shape index: {}]
  %s2 = inlined_call_operand.hbm [shape: f32[256,128], index: 2, kind: input, shape index: {}]
  %s3 = inlined_call_operand.hbm [shape: f32[2,128,128], index: 3, kind: input, shape index: {}]
  %s4 = inlined_call_operand.vmem [shape: f32[3,128], index: 4, kind: input, shape index: {}]
  %s5 = inlined_call_operand.hbm [shape: f32[2,128], index: 5, kind: output, shape index: {}]
  %s6 = sld [smem:[#allocation0]]
  $region76: #{tpu_custom_call.1} parent=0
    _
  %s8 = ssub.s32 1, %s6
  %s9 = scalar_select 0, %s8, %s6
  $region1: #{tpu_custom_call.1} parent=0
    #allocation2 [shape = 'u8[8192]{0}', space=vmem, size = 0x2000, scoped, tag = 'input window, operand 0, single buffered']
    #allocation3 [shape = 'u8[131072]{0}', space=vmem, size = 0x20000, scoped, tag = 'input window, operand 2, single buffered']
    #allocation4 [shape = 's32[1]{0}', space=sflag, size = 0x4, scoped, tag = 'scoped memory for tpu_custom_call.1']
    #allocation5 [shape = 's32[1]{0}', space=sflag, size = 0x4, scoped, tag = 'scoped memory for tpu_custom_call.1']
    #allocation6 [shape = 'u8[131072]{0}', space=vmem, size = 0x20000, scoped, tag = 'input window, operand 3, single buffered']
    #allocation7 [shape = 's32[1]{0}', space=sflag, size = 0x4, scoped, tag = 'scoped memory for tpu_custom_call.1']
    #allocation8 [shape = 'u8[1024]{0}', space=vmem, size = 0x400, scoped, tag = 'output window, operand 0, single buffered']
    %10 = vsyncpa [#allocation4], 0
    %11 = vsyncpa [#allocation7], 0
    %12 = vsyncpa [#allocation5], 0
    // Predicated region
    $region2: #{tpu_custom_call.1} parent=1 // pred_check
      _
    $region3: #{tpu_custom_call.1} parent=1 // pred_check_branch
      %14 = sbr.rel (0) target = $region5
    $region4: #{tpu_custom_call.1} parent=1 // pred_region
      // Predicated region
      $region6: #{tpu_custom_call.1} parent=4 // pred_check
        _
      $region7: #{tpu_custom_call.1} parent=4 // pred_check_branch
        %16 = sbr.rel (0) target = $region9
      $region8: #{tpu_custom_call.1} parent=4 // pred_region
        // Predicated region
        $region10: #{tpu_custom_call.1} parent=8 // pred_check
          _
        $region11: #{tpu_custom_call.1} parent=8 // pred_check_branch
          %18 = sbr.rel (0) target = $region13
        $region12: #{tpu_custom_call.1} parent=8 // pred_region
          // Predicated region
          $region25: #{tpu_custom_call.1} parent=12 // pred_check
            _
          $region26: #{tpu_custom_call.1} parent=12 // pred_check_branch
            %35 = sbr.rel (0) target = $region28
          $region27: #{tpu_custom_call.1} parent=12 // pred_region
            loop: start=0, step=1, limit=1
            $region29: #{tpu_custom_call.1} parent=27 // loop_pre_header
              _
            $region30: #{tpu_custom_call.1} parent=27 // loop_header
              %s37 = sphi 0, %s41
              %p38 = scmp.ge.s32.totalorder %s37, 1
              %s42 = sphi %s0, %s0
              %s43 = sphi [#allocation2], [#allocation2]
            $region31: #{tpu_custom_call.1} parent=27 // loop_header_branch
              %40 = sbr.rel (%p38) target = $region35
            $region32: #{tpu_custom_call.1} parent=27 // loop_body
              %v44 = vld [vmem:[%s42] sm:$0xff]
              %45 = vst [vmem:[%s43] sm:$0xff] %v44
              %v46 = vld [vmem:[%s42 + $0x10] sm:$0xff]
              %47 = vst [vmem:[%s43 + $0x8] sm:$0xff] %v46
            $region33: #{tpu_custom_call.1} parent=27 // loop_footer
              %s41 = sadd.s32 1, %s37
            $region34: #{tpu_custom_call.1} parent=27 // loop_footer_branch
              %36 = sbr.rel target = $region30
            $region35: #{tpu_custom_call.1} parent=27 // loop_exit
              _
          $region28: #{tpu_custom_call.1} parent=12 // pred_fallthru
            _
          // Predicated region
          $region36: #{tpu_custom_call.1} parent=12 // pred_check
            _
          $region37: #{tpu_custom_call.1} parent=12 // pred_check_branch
            %49 = sbr.rel target = $region39
          $region38: #{tpu_custom_call.1} parent=12 // pred_region
            _
          $region39: #{tpu_custom_call.1} parent=12 // pred_fallthru
            _
        $region13: #{tpu_custom_call.1} parent=8 // pred_fallthru
          _
        // Predicated region
        $region14: #{tpu_custom_call.1} parent=8 // pred_check
          _
        $region15: #{tpu_custom_call.1} parent=8 // pred_check_branch
          %20 = sbr.rel target = $region17
        $region16: #{tpu_custom_call.1} parent=8 // pred_region
          loop: start=0, step=1, limit=1
          $region18: #{tpu_custom_call.1} parent=16 // loop_pre_header
            _
          $region19: #{tpu_custom_call.1} parent=16 // loop_header
            %s23 = sphi 0, %s27
            %p24 = scmp.ge.s32.totalorder %s23, 1
            %s28 = sphi %s0, %s0
            %s29 = sphi [#allocation2], [#allocation2]
          $region20: #{tpu_custom_call.1} parent=16 // loop_header_branch
            %26 = sbr.rel (%p24) target = $region24
          $region21: #{tpu_custom_call.1} parent=16 // loop_body
            %v30 = vld [vmem:[%s28] sm:$0xff]
            %31 = vst [vmem:[%s29] sm:$0xff] %v30
            %v32 = vld [vmem:[%s28 + $0x10] sm:$0xff]
            %33 = vst [vmem:[%s29 + $0x8] sm:$0xff] %v32
          $region22: #{tpu_custom_call.1} parent=16 // loop_footer
            %s27 = sadd.s32 1, %s23
          $region23: #{tpu_custom_call.1} parent=16 // loop_footer_branch
            %22 = sbr.rel target = $region19
          $region24: #{tpu_custom_call.1} parent=16 // loop_exit
            _
        $region17: #{tpu_custom_call.1} parent=8 // pred_fallthru
          _
      $region9: #{tpu_custom_call.1} parent=4 // pred_fallthru
        _
      %50 = vnop
    $region5: #{tpu_custom_call.1} parent=1 // pred_fallthru
      _
    // Predicated region
    $region40: #{tpu_custom_call.1} parent=1 // pred_check
      _
    $region41: #{tpu_custom_call.1} parent=1 // pred_check_branch
      %52 = sbr.rel (0) target = $region43
    $region42: #{tpu_custom_call.1} parent=1 // pred_region
      _
    $region43: #{tpu_custom_call.1} parent=1 // pred_fallthru
      _
    // Predicated region
    $region44: #{tpu_custom_call.1} parent=1 // pred_check
      _
    $region45: #{tpu_custom_call.1} parent=1 // pred_check_branch
      %54 = sbr.rel (0) target = $region47
    $region46: #{tpu_custom_call.1} parent=1 // pred_region
      %s56 = ssub.s32 4096, 4096
      %57 = vsyncadd [#allocation4], %s56
      %s58 = sshll.u32 [#allocation3], 4
      %s59 = int_to_ptr.vmem [resolvable:$true] %s58
      %64 = dma.hbm_to_vmem [thread:$0]  %s2, 4096, %s59, [#allocation4], 128, 128, 8
    $region47: #{tpu_custom_call.1} parent=1 // pred_fallthru
      _
    // Predicated region
    $region48: #{tpu_custom_call.1} parent=1 // pred_check
      _
    $region49: #{tpu_custom_call.1} parent=1 // pred_check_branch
      %66 = sbr.rel (0) target = $region51
    $region50: #{tpu_custom_call.1} parent=1 // pred_region
      %s68 = ssub.s32 4096, 4096
      %69 = vsyncadd [#allocation7], %s68
      %s70 = sshll.u32 [#allocation6], 4
      %s71 = int_to_ptr.vmem [resolvable:$true] %s70
      %76 = dma.hbm_to_vmem [thread:$0]  %s3, 4096, %s71, [#allocation7], 128, 128, 8
    $region51: #{tpu_custom_call.1} parent=1 // pred_fallthru
      _
    // Predicated region
    $region52: #{tpu_custom_call.1} parent=1 // pred_check
      _
    $region53: #{tpu_custom_call.1} parent=1 // pred_check_branch
      %78 = sbr.rel (0) target = $region55
    $region54: #{tpu_custom_call.1} parent=1 // pred_region
      _
    $region55: #{tpu_custom_call.1} parent=1 // pred_fallthru
      _
    // Predicated region
    $region56: #{tpu_custom_call.1} parent=1 // pred_check
      _
    $region57: #{tpu_custom_call.1} parent=1 // pred_check_branch
      %80 = sbr.rel (0) target = $region59
    $region58: #{tpu_custom_call.1} parent=1 // pred_region
      _
    $region59: #{tpu_custom_call.1} parent=1 // pred_fallthru
      _
    // Predicated region
    $region60: #{tpu_custom_call.1} parent=1 // pred_check
      _
    $region61: #{tpu_custom_call.1} parent=1 // pred_check_branch
      %82 = sbr.rel (0) target = $region63
    $region62: #{tpu_custom_call.1} parent=1 // pred_region
      %83 = dma.done [#allocation4], 4096
    $region63: #{tpu_custom_call.1} parent=1 // pred_fallthru
      _
    // Predicated region
    $region64: #{tpu_custom_call.1} parent=1 // pred_check
      _
    $region65: #{tpu_custom_call.1} parent=1 // pred_check_branch
      %85 = sbr.rel (0) target = $region67
    $region66: #{tpu_custom_call.1} parent=1 // pred_region
      %86 = dma.done [#allocation7], 4096
    $region67: #{tpu_custom_call.1} parent=1 // pred_fallthru
      _
    %v87 = vld [vmem:[#allocation2] sm:$0xff]
    %v88 = vld [vmem:[#allocation2 + $0x8] sm:$0xff]
    %v89 = vrot.slane %v87, 4
    %v90 = vadd.f32 %v87, %v89
    %v91 = vrot.slane %v90, 2
    %v92 = vadd.f32 %v90, %v91
    %v93 = vrot.slane %v92, 1
    %v94 = vadd.f32 %v92, %v93
    %v95 = vrot.slane %v88, 4
    %v96 = vadd.f32 %v88, %v95
    %v97 = vrot.slane %v96, 2
    %v98 = vadd.f32 %v96, %v97
    %v99 = vrot.slane %v98, 1
    %v100 = vadd.f32 %v98, %v99
    %v101 = vld [vmem:[%s1] sm:$0xff]
    %v102 = vld [vmem:[%s1 + $0x8] sm:$0xff]
    %v103 = vrot.slane %v101, 4
    %v104 = vadd.f32 %v101, %v103
    %v105 = vrot.slane %v104, 2
    %v106 = vadd.f32 %v104, %v105
    %v107 = vrot.slane %v106, 1
    %v108 = vadd.f32 %v106, %v107
    %v109 = vrot.slane %v102, 4
    %v110 = vadd.f32 %v102, %v109
    %v111 = vrot.slane %v110, 2
    %v112 = vadd.f32 %v110, %v111
    %v113 = vrot.slane %v112, 1
    %v114 = vadd.f32 %v112, %v113
    %vm117 = vcmask 1041409
    %v118 = vsel %vm117, %v100, %v94
    %v122 = vsel %vm117, %v114, %v108
    %v124 = vld [vmem:[#allocation3] sm:$0xff]
    %v125 = vld [vmem:[#allocation3 + $0x8] sm:$0xff]
    %v126 = vld [vmem:[#allocation3 + $0x10] sm:$0xff]
    %v127 = vld [vmem:[#allocation3 + $0x18] sm:$0xff]
    %v128 = vld [vmem:[#allocation3 + $0x20] sm:$0xff]
    %v129 = vld [vmem:[#allocation3 + $0x28] sm:$0xff]
    %v130 = vld [vmem:[#allocation3 + $0x30] sm:$0xff]
    %v131 = vld [vmem:[#allocation3 + $0x38] sm:$0xff]
    %v132 = vld [vmem:[#allocation3 + $0x40] sm:$0xff]
    %v133 = vld [vmem:[#allocation3 + $0x48] sm:$0xff]
    %v134 = vld [vmem:[#allocation3 + $0x50] sm:$0xff]
    %v135 = vld [vmem:[#allocation3 + $0x58] sm:$0xff]
    %v136 = vld [vmem:[#allocation3 + $0x60] sm:$0xff]
    %v137 = vld [vmem:[#allocation3 + $0x68] sm:$0xff]
    %v138 = vld [vmem:[#allocation3 + $0x70] sm:$0xff]
    %v139 = vld [vmem:[#allocation3 + $0x78] sm:$0xff]
    %v140 = vld [vmem:[#allocation3 + $0x80] sm:$0xff]
    %v141 = vld [vmem:[#allocation3 + $0x88] sm:$0xff]
    %v142 = vld [vmem:[#allocation3 + $0x90] sm:$0xff]
    %v143 = vld [vmem:[#allocation3 + $0x98] sm:$0xff]
    %v144 = vld [vmem:[#allocation3 + $0xa0] sm:$0xff]
    %v145 = vld [vmem:[#allocation3 + $0xa8] sm:$0xff]
    %v146 = vld [vmem:[#allocation3 + $0xb0] sm:$0xff]
    %v147 = vld [vmem:[#allocation3 + $0xb8] sm:$0xff]
    %v148 = vld [vmem:[#allocation3 + $0xc0] sm:$0xff]
    %v149 = vld [vmem:[#allocation3 + $0xc8] sm:$0xff]
    %v150 = vld [vmem:[#allocation3 + $0xd0] sm:$0xff]
    %v151 = vld [vmem:[#allocation3 + $0xd8] sm:$0xff]
    %v152 = vld [vmem:[#allocation3 + $0xe0] sm:$0xff]
    %v153 = vld [vmem:[#allocation3 + $0xe8] sm:$0xff]
    %v154 = vld [vmem:[#allocation3 + $0xf0] sm:$0xff]
    %v155 = vld [vmem:[#allocation3 + $0xf8] sm:$0xff]
    %v156 = vld [vmem:[%s4] sm:$0x1]
    %v157 = vlaneseq
    %v158 = vshrl.u32 %v157, 7
    %v159 = vsub.s32 0, %v158
    %v160 = vrot.slane %v156, %v159
    %161 = vmatprep.subr.mxu0 0.0
    %162 = vmatpush1.msra.mxu0 %v124
    %163 = vmatprep.subr.mxu0 0.0
    %164 = vmatpush1.msra.mxu0 %v125
    %165 = vmatprep.subr.mxu0 0.0
    %166 = vmatpush1.msra.mxu0 %v126
    %167 = vmatprep.subr.mxu0 0.0
    %168 = vmatpush1.msra.mxu0 %v127
    %169 = vmatprep.subr.mxu0 0.0
    %170 = vmatpush1.msra.mxu0 %v128
    %171 = vmatprep.subr.mxu0 0.0
    %172 = vmatpush1.msra.mxu0 %v129
    %173 = vmatprep.subr.mxu0 0.0
    %174 = vmatpush1.msra.mxu0 %v130
    %175 = vmatprep.subr.mxu0 0.0
    %176 = vmatpush1.msra.mxu0 %v131
    %177 = vmatprep.subr.mxu0 0.0
    %178 = vmatpush1.msra.mxu0 %v132
    %179 = vmatprep.subr.mxu0 0.0
    %180 = vmatpush1.msra.mxu0 %v133
    %181 = vmatprep.subr.mxu0 0.0
    %182 = vmatpush1.msra.mxu0 %v134
    %183 = vmatprep.subr.mxu0 0.0
    %184 = vmatpush1.msra.mxu0 %v135
    %185 = vmatprep.subr.mxu0 0.0
    %186 = vmatpush1.msra.mxu0 %v136
    %187 = vmatprep.subr.mxu0 0.0
    %188 = vmatpush1.msra.mxu0 %v137
    %189 = vmatprep.subr.mxu0 0.0
    %190 = vmatpush1.msra.mxu0 %v138
    %191 = vmatprep.subr.mxu0 0.0
    %192 = vmatpush1.msra.mxu0 %v139
    %193 = vmatprep.subr.mxu0 0.0
    %194 = vmatpush1.msra.mxu0 %v140
    %195 = vmatprep.subr.mxu0 0.0
    %196 = vmatpush1.msra.mxu0 %v141
    %197 = vmatprep.subr.mxu0 0.0
    %198 = vmatpush1.msra.mxu0 %v142
    %199 = vmatprep.subr.mxu0 0.0
    %200 = vmatpush1.msra.mxu0 %v143
    %201 = vmatprep.subr.mxu0 0.0
    %202 = vmatpush1.msra.mxu0 %v144
    %203 = vmatprep.subr.mxu0 0.0
    %204 = vmatpush1.msra.mxu0 %v145
    %205 = vmatprep.subr.mxu0 0.0
    %206 = vmatpush1.msra.mxu0 %v146
    %207 = vmatprep.subr.mxu0 0.0
    %208 = vmatpush1.msra.mxu0 %v147
    %209 = vmatprep.subr.mxu0 0.0
    %210 = vmatpush1.msra.mxu0 %v148
    %211 = vmatprep.subr.mxu0 0.0
    %212 = vmatpush1.msra.mxu0 %v149
    %213 = vmatprep.subr.mxu0 0.0
    %214 = vmatpush1.msra.mxu0 %v150
    %215 = vmatprep.subr.mxu0 0.0
    %216 = vmatpush1.msra.mxu0 %v151
    %217 = vmatprep.subr.mxu0 0.0
    %218 = vmatpush1.msra.mxu0 %v152
    %219 = vmatprep.subr.mxu0 0.0
    %220 = vmatpush1.msra.mxu0 %v153
    %221 = vmatprep.subr.mxu0 0.0
    %222 = vmatpush1.msra.mxu0 %v154
    %223 = vmatprep.subr.mxu0 0.0
    %224 = vmatpush1.msra.mxu0 %v155
    %225 = vmatprep.mubr.f32.mxu0 %v122
    %226 = vmatmul.mubr.f32.gmra.mrb[0].mxu0 %v118
    %v227 = vpop.f32.mrb[0].mxu0
    %v228 = vadd.f32 %v160, %v227
    %v229 = vpop.f32.mrb[0].mxu0
    %230 = vdwg.mxu0
    %v231 = vmax.f32 %v228, 0.0
    %v232 = vld [vmem:[#allocation6] sm:$0xff]
    %v233 = vld [vmem:[#allocation6 + $0x8] sm:$0xff]
    %v234 = vld [vmem:[#allocation6 + $0x10] sm:$0xff]
    %v235 = vld [vmem:[#allocation6 + $0x18] sm:$0xff]
    %v236 = vld [vmem:[#allocation6 + $0x20] sm:$0xff]
    %v237 = vld [vmem:[#allocation6 + $0x28] sm:$0xff]
    %v238 = vld [vmem:[#allocation6 + $0x30] sm:$0xff]
    %v239 = vld [vmem:[#allocation6 + $0x38] sm:$0xff]
    %v240 = vld [vmem:[#allocation6 + $0x40] sm:$0xff]
    %v241 = vld [vmem:[#allocation6 + $0x48] sm:$0xff]
    %v242 = vld [vmem:[#allocation6 + $0x50] sm:$0xff]
    %v243 = vld [vmem:[#allocation6 + $0x58] sm:$0xff]
    %v244 = vld [vmem:[#allocation6 + $0x60] sm:$0xff]
    %v245 = vld [vmem:[#allocation6 + $0x68] sm:$0xff]
    %v246 = vld [vmem:[#allocation6 + $0x70] sm:$0xff]
    %v247 = vld [vmem:[#allocation6 + $0x78] sm:$0xff]
    %v248 = vld [vmem:[%s4 + $0x1] sm:$0x1]
    %v249 = vlaneseq
    %v250 = vshrl.u32 %v249, 7
    %v251 = vsub.s32 0, %v250
    %v252 = vrot.slane %v248, %v251
    %253 = vmatprep.subr.mxu0 0.0
    %254 = vmatpush1.msra.mxu0 %v232
    %255 = vmatprep.subr.mxu0 0.0
    %256 = vmatpush1.msra.mxu0 %v233
    %257 = vmatprep.subr.mxu0 0.0
    %258 = vmatpush1.msra.mxu0 %v234
    %259 = vmatprep.subr.mxu0 0.0
    %260 = vmatpush1.msra.mxu0 %v235
    %261 = vmatprep.subr.mxu0 0.0
    %262 = vmatpush1.msra.mxu0 %v236
    %263 = vmatprep.subr.mxu0 0.0
    %264 = vmatpush1.msra.mxu0 %v237
    %265 = vmatprep.subr.mxu0 0.0
    %266 = vmatpush1.msra.mxu0 %v238
    %267 = vmatprep.subr.mxu0 0.0
    %268 = vmatpush1.msra.mxu0 %v239
    %269 = vmatprep.subr.mxu0 0.0
    %270 = vmatpush1.msra.mxu0 %v240
    %271 = vmatprep.subr.mxu0 0.0
    %272 = vmatpush1.msra.mxu0 %v241
    %273 = vmatprep.subr.mxu0 0.0
    %274 = vmatpush1.msra.mxu0 %v242
    %275 = vmatprep.subr.mxu0 0.0
    %276 = vmatpush1.msra.mxu0 %v243
    %277 = vmatprep.subr.mxu0 0.0
    %278 = vmatpush1.msra.mxu0 %v244
    %279 = vmatprep.subr.mxu0 0.0
    %280 = vmatpush1.msra.mxu0 %v245
    %281 = vmatprep.subr.mxu0 0.0
    %282 = vmatpush1.msra.mxu0 %v246
    %283 = vmatprep.subr.mxu0 0.0
    %284 = vmatpush1.msra.mxu0 %v247
    %285 = vmatprep.subr.mxu0 0.0
    %286 = vmatpush1.msra.mxu0 0.0
    %287 = vmatprep.subr.mxu0 0.0
    %288 = vmatpush1.msra.mxu0 0.0
    %289 = vmatprep.subr.mxu0 0.0
    %290 = vmatpush1.msra.mxu0 0.0
    %291 = vmatprep.subr.mxu0 0.0
    %292 = vmatpush1.msra.mxu0 0.0
    %293 = vmatprep.subr.mxu0 0.0
    %294 = vmatpush1.msra.mxu0 0.0
    %295 = vmatprep.subr.mxu0 0.0
    %296 = vmatpush1.msra.mxu0 0.0
    %297 = vmatprep.subr.mxu0 0.0
    %298 = vmatpush1.msra.mxu0 0.0
    %299 = vmatprep.subr.mxu0 0.0
    %300 = vmatpush1.msra.mxu0 0.0
    %301 = vmatprep.subr.mxu0 0.0
    %302 = vmatpush1.msra.mxu0 0.0
    %303 = vmatprep.subr.mxu0 0.0
    %304 = vmatpush1.msra.mxu0 0.0
    %305 = vmatprep.subr.mxu0 0.0
    %306 = vmatpush1.msra.mxu0 0.0
    %307 = vmatprep.subr.mxu0 0.0
    %308 = vmatpush1.msra.mxu0 0.0
    %309 = vmatprep.subr.mxu0 0.0
    %310 = vmatpush1.msra.mxu0 0.0
    %311 = vmatprep.subr.mxu0 0.0
    %312 = vmatpush1.msra.mxu0 0.0
    %313 = vmatprep.subr.mxu0 0.0
    %314 = vmatpush1.msra.mxu0 0.0
    %315 = vmatprep.subr.mxu0 0.0
    %316 = vmatpush1.msra.mxu0 0.0
    %317 = vmatprep.mubr.f32.mxu0 0.0
    %318 = vmatmul.mubr.f32.gmra.mrb[0].mxu0 %v231
    %v319 = vpop.f32.mrb[0].mxu0
    %v320 = vadd.f32 %v252, %v319
    %v321 = vpop.f32.mrb[0].mxu0
    %322 = vdwg.mxu0
    %v323 = vmax.f32 %v320, 0.0
    %s324 = scalar_lea.vmem [#allocation6], 128
    %v325 = vld [vmem:[%s324] sm:$0xff]
    %v326 = vld [vmem:[%s324 + $0x8] sm:$0xff]
    %v327 = vld [vmem:[%s324 + $0x10] sm:$0xff]
    %v328 = vld [vmem:[%s324 + $0x18] sm:$0xff]
    %v329 = vld [vmem:[%s324 + $0x20] sm:$0xff]
    %v330 = vld [vmem:[%s324 + $0x28] sm:$0xff]
    %v331 = vld [vmem:[%s324 + $0x30] sm:$0xff]
    %v332 = vld [vmem:[%s324 + $0x38] sm:$0xff]
    %v333 = vld [vmem:[%s324 + $0x40] sm:$0xff]
    %v334 = vld [vmem:[%s324 + $0x48] sm:$0xff]
    %v335 = vld [vmem:[%s324 + $0x50] sm:$0xff]
    %v336 = vld [vmem:[%s324 + $0x58] sm:$0xff]
    %v337 = vld [vmem:[%s324 + $0x60] sm:$0xff]
    %v338 = vld [vmem:[%s324 + $0x68] sm:$0xff]
    %v339 = vld [vmem:[%s324 + $0x70] sm:$0xff]
    %v340 = vld [vmem:[%s324 + $0x78] sm:$0xff]
    %v341 = vld [vmem:[%s4 + $0x2] sm:$0x1]
    %v342 = vlaneseq
    %v343 = vshrl.u32 %v342, 7
    %v344 = vsub.s32 0, %v343
    %v345 = vrot.slane %v341, %v344
    %346 = vmatprep.subr.mxu0 0.0
    %347 = vmatpush1.msra.mxu0 %v325
    %348 = vmatprep.subr.mxu0 0.0
    %349 = vmatpush1.msra.mxu0 %v326
    %350 = vmatprep.subr.mxu0 0.0
    %351 = vmatpush1.msra.mxu0 %v327
    %352 = vmatprep.subr.mxu0 0.0
    %353 = vmatpush1.msra.mxu0 %v328
    %354 = vmatprep.subr.mxu0 0.0
    %355 = vmatpush1.msra.mxu0 %v329
    %356 = vmatprep.subr.mxu0 0.0
    %357 = vmatpush1.msra.mxu0 %v330
    %358 = vmatprep.subr.mxu0 0.0
    %359 = vmatpush1.msra.mxu0 %v331
    %360 = vmatprep.subr.mxu0 0.0
    %361 = vmatpush1.msra.mxu0 %v332
    %362 = vmatprep.subr.mxu0 0.0
    %363 = vmatpush1.msra.mxu0 %v333
    %364 = vmatprep.subr.mxu0 0.0
    %365 = vmatpush1.msra.mxu0 %v334
    %366 = vmatprep.subr.mxu0 0.0
    %367 = vmatpush1.msra.mxu0 %v335
    %368 = vmatprep.subr.mxu0 0.0
    %369 = vmatpush1.msra.mxu0 %v336
    %370 = vmatprep.subr.mxu0 0.0
    %371 = vmatpush1.msra.mxu0 %v337
    %372 = vmatprep.subr.mxu0 0.0
    %373 = vmatpush1.msra.mxu0 %v338
    %374 = vmatprep.subr.mxu0 0.0
    %375 = vmatpush1.msra.mxu0 %v339
    %376 = vmatprep.subr.mxu0 0.0
    %377 = vmatpush1.msra.mxu0 %v340
    %378 = vmatprep.subr.mxu0 0.0
    %379 = vmatpush1.msra.mxu0 0.0
    %380 = vmatprep.subr.mxu0 0.0
    %381 = vmatpush1.msra.mxu0 0.0
    %382 = vmatprep.subr.mxu0 0.0
    %383 = vmatpush1.msra.mxu0 0.0
    %384 = vmatprep.subr.mxu0 0.0
    %385 = vmatpush1.msra.mxu0 0.0
    %386 = vmatprep.subr.mxu0 0.0
    %387 = vmatpush1.msra.mxu0 0.0
    %388 = vmatprep.subr.mxu0 0.0
    %389 = vmatpush1.msra.mxu0 0.0
    %390 = vmatprep.subr.mxu0 0.0
    %391 = vmatpush1.msra.mxu0 0.0
    %392 = vmatprep.subr.mxu0 0.0
    %393 = vmatpush1.msra.mxu0 0.0
    %394 = vmatprep.subr.mxu0 0.0
    %395 = vmatpush1.msra.mxu0 0.0
    %396 = vmatprep.subr.mxu0 0.0
    %397 = vmatpush1.msra.mxu0 0.0
    %398 = vmatprep.subr.mxu0 0.0
    %399 = vmatpush1.msra.mxu0 0.0
    %400 = vmatprep.subr.mxu0 0.0
    %401 = vmatpush1.msra.mxu0 0.0
    %402 = vmatprep.subr.mxu0 0.0
    %403 = vmatpush1.msra.mxu0 0.0
    %404 = vmatprep.subr.mxu0 0.0
    %405 = vmatpush1.msra.mxu0 0.0
    %406 = vmatprep.subr.mxu0 0.0
    %407 = vmatpush1.msra.mxu0 0.0
    %408 = vmatprep.subr.mxu0 0.0
    %409 = vmatpush1.msra.mxu0 0.0
    %410 = vmatprep.mubr.f32.mxu0 0.0
    %411 = vmatmul.mubr.f32.gmra.mrb[0].mxu0 %v323
    %v412 = vpop.f32.mrb[0].mxu0
    %v413 = vadd.f32 %v345, %v412
    %v414 = vpop.f32.mrb[0].mxu0
    %415 = vdwg.mxu0
    %416 = vst [vmem:[#allocation8] sm:$0x3] %v413
    // Predicated region
    $region68: #{tpu_custom_call.1} parent=1 // pred_check
      _
    $region69: #{tpu_custom_call.1} parent=1 // pred_check_branch
      %418 = sbr.rel (0) target = $region71
    $region70: #{tpu_custom_call.1} parent=1 // pred_region
      %s420 = ssub.s32 32, 32
      %421 = vsyncadd [#allocation5], %s420
      %s423 = sshll.u32 [#allocation8], 4
      %s424 = int_to_ptr.vmem [resolvable:$true] %s423
      %426 = dma.vmem_to_hbm [thread:$0]  %s424, 32, %s5, [#allocation5]
    $region71: #{tpu_custom_call.1} parent=1 // pred_fallthru
      _
    // Predicated region
    $region72: #{tpu_custom_call.1} parent=1 // pred_check
      _
    $region73: #{tpu_custom_call.1} parent=1 // pred_check_branch
      %428 = sbr.rel (0) target = $region75
    $region74: #{tpu_custom_call.1} parent=1 // pred_region
      %429 = dma.done [#allocation5], 32
    $region75: #{tpu_custom_call.1} parent=1 // pred_fallthru
      _
    %430 = vsyncpa [#allocation4], 1
    %431 = vsyncpa [#allocation7], 1
    %432 = vsyncpa [#allocation5], 1

</llo_original>
